<compile_context>
chip_gen: v7x
topology: tpu7x:2x2x1
jax: 0.10.0
libtpu: 0.0.40
codegen_flags: <defaults>
</compile_context>

<pallas_src>
import jax
import jax.numpy as jnp
from jax import lax
from jax.experimental import pallas as pl
from jax.experimental.pallas import tpu as pltpu


def lstm_tagger_kernel(ids_ref, emb_ref, wih_ref, whh_ref, b_ref,
                       wout_ref, bout_ref, out_ref, hs_ref):
    seq = out_ref.shape[0]
    vocab = emb_ref.shape[0]
    H = whh_ref.shape[0]

    # ---- prologue: one-hot gather + hoisted input projection (MXU) -----
    ids = ids_ref[...]                                           # (seq, 1) int32
    onehot = (lax.broadcasted_iota(jnp.int32, (seq, vocab), 1) == ids
              ).astype(jnp.float32)                              # (seq, vocab)
    # Exact gather: each one-hot row selects a single embedding row.
    xs = jnp.dot(onehot, emb_ref[...],
                 preferred_element_type=jnp.float32)             # (seq, E)
    # One batched matmul replaces `seq` serial (1,E)x(E,4H) matvecs.
    xproj = jnp.dot(xs, wih_ref[...],
                    preferred_element_type=jnp.float32) + b_ref[...]   # (seq, 4H)

    whh = whh_ref[...]                                           # (H, 4H), loaded once

    # sigmoid(x) = 0.5*tanh(0.5*x) + 0.5 (exact), so a single tanh on the
    # scaled gates vreg produces all four activations:
    #   scale = [0.5, 0.5, 1.0, 0.5]  per gate group [i, f, g, o]
    #   act   = scale * tanh(scale * gates) + [0.5, 0.5, 0.0, 0.5]
    lane = lax.broadcasted_iota(jnp.int32, (1, 4 * H), 1)
    g_grp = (lane >= 2 * H) & (lane < 3 * H)                     # g-gate lanes
    scale = jnp.where(g_grp, 1.0, 0.5).astype(jnp.float32)       # (1, 4H)
    shift = jnp.where(g_grp, 0.0, 0.5).astype(jnp.float32)       # (1, 4H)

    # ---- fully-unrolled recurrence, state in registers -----------------
    h = jnp.zeros((1, H), jnp.float32)                           # h0 = 0
    c = jnp.zeros((1, H), jnp.float32)                           # c0 = 0
    for t in range(seq):
        gates = jnp.dot(h, whh,
                        preferred_element_type=jnp.float32) + xproj[t:t + 1, :]
        act = scale * jnp.tanh(gates * scale) + shift            # one EUP op/step
        i_g = act[:, 0 * H:1 * H]                                # sigmoid(i)
        f_g = act[:, 1 * H:2 * H]                                # sigmoid(f)
        g_g = act[:, 2 * H:3 * H]                                # tanh(g)
        o_g = act[:, 3 * H:4 * H]                                # sigmoid(o)
        c = f_g * c + i_g * g_g
        h = o_g * jnp.tanh(c)
        hs_ref[pl.ds(t, 1), :] = h                               # off-chain vst

    # ---- hidden2tag + log_softmax over the tag dimension ----------------
    hs = hs_ref[...]                                             # (seq, H)
    tag = jnp.dot(hs, wout_ref[...],
                  preferred_element_type=jnp.float32) + bout_ref[...]   # (seq, T)
    m = jnp.max(tag, axis=-1, keepdims=True)
    lse = m + jnp.log(jnp.sum(jnp.exp(tag - m), axis=-1, keepdims=True))
    out_ref[...] = tag - lse


def lstm_tagger(sentence, emb, w_ih, w_hh, bias, w_out, b_out):
    seq = sentence.shape[0]
    T = w_out.shape[1]
    H = w_hh.shape[0]
    vocab = emb.shape[0]
    # Out-of-range ids would silently yield a zero one-hot row; clip so the
    # behavior matches an in-range gather (PyTorch would error instead).
    ids = jnp.clip(sentence, 0, vocab - 1).astype(jnp.int32).reshape(seq, 1)

    vmem = pl.BlockSpec(memory_space=pltpu.MemorySpace.VMEM)
    return pl.pallas_call(
        lstm_tagger_kernel,
        out_shape=jax.ShapeDtypeStruct((seq, T), jnp.float32),
        in_specs=[vmem, vmem, vmem, vmem, vmem, vmem, vmem],
        out_specs=vmem,
        scratch_shapes=[pltpu.VMEM((seq, H), jnp.float32)],
    )(ids, emb, w_ih, w_hh, bias, w_out, b_out)


def reference(sentence, emb, w_ih, w_hh, bias, w_out, b_out):
    """Pure-JAX reference matching PyTorch nn.LSTM semantics."""
    H = w_hh.shape[0]
    x = emb[sentence]                             # (seq, E)

    def step(carry, x_t):
        h, c = carry
        gates = x_t @ w_ih + h @ w_hh + bias[0]
        i = jax.nn.sigmoid(gates[0 * H:1 * H])
        f = jax.nn.sigmoid(gates[1 * H:2 * H])
        g = jnp.tanh(gates[2 * H:3 * H])
        o = jax.nn.sigmoid(gates[3 * H:4 * H])
        c = f * c + i * g
        h = o * jnp.tanh(c)
        return (h, c), h

    (_, _), hs = lax.scan(step, (jnp.zeros((H,)), jnp.zeros((H,))), x)
    tag = hs @ w_out + b_out[0]
    return jax.nn.log_softmax(tag, axis=1)


if __name__ == "__main__":
    # small shapes implied by the module's forward
    vocab_size, embedding_dim, hidden_dim, tagset_size, seq_len = 20, 16, 32, 8, 8

    key = jax.random.PRNGKey(0)
    ks = jax.random.split(key, 8)
    scale = 1.0 / jnp.sqrt(hidden_dim)

    sentence = jax.random.randint(ks[0], (seq_len,), 0, vocab_size, dtype=jnp.int32)
    emb = jax.random.normal(ks[1], (vocab_size, embedding_dim), jnp.float32)
    # PyTorch stores weight_ih as (4H, E); we keep the transposed (E, 4H) layout.
    w_ih = jax.random.uniform(ks[2], (embedding_dim, 4 * hidden_dim), jnp.float32,
                              -scale, scale)
    w_hh = jax.random.uniform(ks[3], (hidden_dim, 4 * hidden_dim), jnp.float32,
                              -scale, scale)
    # bias = bias_ih + bias_hh, stored as (1, 4H)
    bias = (jax.random.uniform(ks[4], (1, 4 * hidden_dim), jnp.float32, -scale, scale)
            + jax.random.uniform(ks[5], (1, 4 * hidden_dim), jnp.float32, -scale, scale))
    w_out = jax.random.uniform(ks[6], (hidden_dim, tagset_size), jnp.float32,
                               -scale, scale)
    b_out = jax.random.uniform(ks[7], (1, tagset_size), jnp.float32, -scale, scale)

    out = lstm_tagger(sentence, emb, w_ih, w_hh, bias, w_out, b_out)
    out = jax.block_until_ready(out)

    ref = reference(sentence, emb, w_ih, w_hh, bias, w_out, b_out)
    assert out.shape == (seq_len, tagset_size)
    assert jnp.allclose(out, ref, atol=1e-4, rtol=1e-3), "mismatch vs reference"

    print("KERNEL_OK")
</pallas_src>

<mosaic_0001>
module attributes {stable_mosaic.version = 11 : i64} {
  func.func @lstm_tagger_kernel(%arg0: memref<8x1xi32, #tpu.memory_space<vmem>>, %arg1: memref<20x16xf32, #tpu.memory_space<vmem>>, %arg2: memref<16x128xf32, #tpu.memory_space<vmem>>, %arg3: memref<32x128xf32, #tpu.memory_space<vmem>>, %arg4: memref<1x128xf32, #tpu.memory_space<vmem>>, %arg5: memref<32x8xf32, #tpu.memory_space<vmem>>, %arg6: memref<1x8xf32, #tpu.memory_space<vmem>>, %arg7: memref<8x8xf32, #tpu.memory_space<vmem>>, %arg8: memref<8x32xf32, #tpu.memory_space<vmem>>) attributes {dimension_semantics = [], scalar_prefetch = 0 : i64, scratch_operands = 1 : i64, tpu.core_type = #tpu.core_type<tc>} {
    %c0 = arith.constant 0 : index
    %c0_0 = arith.constant 0 : index
    %0 = vector.load %arg0[%c0, %c0_0] : memref<8x1xi32, #tpu.memory_space<vmem>>, vector<8x1xi32>
    %1 = tpu.iota {dimensions = array<i32: 1>} : vector<8x20xi32>
    %2 = vector.broadcast %0 : vector<8x1xi32> to vector<8x20xi32>
    %3 = arith.cmpi eq, %1, %2 : vector<8x20xi32>
    %4 = arith.extui %3 : vector<8x20xi1> to vector<8x20xi32>
    %5 = arith.sitofp %4 : vector<8x20xi32> to vector<8x20xf32>
    %c0_1 = arith.constant 0 : index
    %c0_2 = arith.constant 0 : index
    %6 = vector.load %arg1[%c0_1, %c0_2] : memref<20x16xf32, #tpu.memory_space<vmem>>, vector<20x16xf32>
    %cst = arith.constant dense<0.000000e+00> : vector<8x16xf32>
    %7 = tpu.matmul %5, %6, %cst {dimension_numbers = #tpu.dot_dimension_numbers<[1], [0], [0], [1], [0, 0, 1, 1], [], []>} : vector<8x20xf32>, vector<20x16xf32>, vector<8x16xf32> -> vector<8x16xf32>
    %c0_3 = arith.constant 0 : index
    %c0_4 = arith.constant 0 : index
    %8 = vector.load %arg2[%c0_3, %c0_4] : memref<16x128xf32, #tpu.memory_space<vmem>>, vector<16x128xf32>
    %cst_5 = arith.constant dense<0.000000e+00> : vector<8x128xf32>
    %9 = tpu.matmul %7, %8, %cst_5 {dimension_numbers = #tpu.dot_dimension_numbers<[1], [0], [0], [1], [0, 0, 1, 1], [], []>} : vector<8x16xf32>, vector<16x128xf32>, vector<8x128xf32> -> vector<8x128xf32>
    %c0_6 = arith.constant 0 : index
    %c0_7 = arith.constant 0 : index
    %10 = vector.load %arg4[%c0_6, %c0_7] : memref<1x128xf32, #tpu.memory_space<vmem>>, vector<1x128xf32>
    %11 = vector.broadcast %10 : vector<1x128xf32> to vector<8x128xf32>
    %12 = arith.addf %9, %11 : vector<8x128xf32>
    %c0_8 = arith.constant 0 : index
    %c0_9 = arith.constant 0 : index
    %13 = vector.load %arg3[%c0_8, %c0_9] : memref<32x128xf32, #tpu.memory_space<vmem>>, vector<32x128xf32>
    %14 = tpu.iota {dimensions = array<i32: 1>} : vector<1x128xi32>
    %c64_i32 = arith.constant 64 : i32
    %15 = vector.broadcast %c64_i32 : i32 to vector<1x128xi32>
    %16 = arith.cmpi sge, %14, %15 : vector<1x128xi32>
    %c96_i32 = arith.constant 96 : i32
    %17 = vector.broadcast %c96_i32 : i32 to vector<1x128xi32>
    %18 = arith.cmpi slt, %14, %17 : vector<1x128xi32>
    %19 = arith.andi %16, %18 : vector<1x128xi1>
    %cst_10 = arith.constant 1.000000e+00 : f32
    %cst_11 = arith.constant 5.000000e-01 : f32
    %20 = vector.broadcast %cst_10 : f32 to vector<1x128xf32>
    %21 = vector.broadcast %cst_11 : f32 to vector<1x128xf32>
    %22 = arith.select %19, %20, %21 : vector<1x128xi1>, vector<1x128xf32>
    %cst_12 = arith.constant 0.000000e+00 : f32
    %cst_13 = arith.constant 5.000000e-01 : f32
    %23 = vector.broadcast %cst_12 : f32 to vector<1x128xf32>
    %24 = vector.broadcast %cst_13 : f32 to vector<1x128xf32>
    %25 = arith.select %19, %23, %24 : vector<1x128xi1>, vector<1x128xf32>
    %cst_14 = arith.constant 0.000000e+00 : f32
    %26 = vector.broadcast %cst_14 : f32 to vector<1x32xf32>
    %cst_15 = arith.constant 0.000000e+00 : f32
    %27 = vector.broadcast %cst_15 : f32 to vector<1x32xf32>
    %cst_16 = arith.constant dense<0.000000e+00> : vector<1x128xf32>
    %28 = tpu.matmul %26, %13, %cst_16 {dimension_numbers = #tpu.dot_dimension_numbers<[1], [0], [0], [1], [0, 0, 1, 1], [], []>} : vector<1x32xf32>, vector<32x128xf32>, vector<1x128xf32> -> vector<1x128xf32>
    %29 = vector.extract_strided_slice %12 {offsets = [0, 0], sizes = [1, 128], strides = [1, 1]} : vector<8x128xf32> to vector<1x128xf32>
    %30 = arith.addf %28, %29 : vector<1x128xf32>
    %31 = arith.mulf %30, %22 : vector<1x128xf32>
    %32 = math.tanh %31 : vector<1x128xf32>
    %33 = arith.mulf %22, %32 : vector<1x128xf32>
    %34 = arith.addf %33, %25 : vector<1x128xf32>
    %35 = vector.extract_strided_slice %34 {offsets = [0, 0], sizes = [1, 32], strides = [1, 1]} : vector<1x128xf32> to vector<1x32xf32>
    %36 = vector.extract_strided_slice %34 {offsets = [0, 32], sizes = [1, 32], strides = [1, 1]} : vector<1x128xf32> to vector<1x32xf32>
    %37 = vector.extract_strided_slice %34 {offsets = [0, 64], sizes = [1, 32], strides = [1, 1]} : vector<1x128xf32> to vector<1x32xf32>
    %38 = vector.extract_strided_slice %34 {offsets = [0, 96], sizes = [1, 32], strides = [1, 1]} : vector<1x128xf32> to vector<1x32xf32>
    %39 = arith.mulf %36, %27 : vector<1x32xf32>
    %40 = arith.mulf %35, %37 : vector<1x32xf32>
    %41 = arith.addf %39, %40 : vector<1x32xf32>
    %42 = math.tanh %41 : vector<1x32xf32>
    %43 = arith.mulf %38, %42 : vector<1x32xf32>
    %c0_17 = arith.constant 0 : index
    %c0_18 = arith.constant 0 : index
    %44 = vector.load %arg8[%c0_17, %c0_18] : memref<8x32xf32, #tpu.memory_space<vmem>>, vector<1x32xf32>
    tpu.vector_store %arg8[%c0_17, %c0_18], %43 {strides = array<i32>} : memref<8x32xf32, #tpu.memory_space<vmem>>, vector<1x32xf32>,
    %cst_19 = arith.constant dense<0.000000e+00> : vector<1x128xf32>
    %45 = tpu.matmul %43, %13, %cst_19 {dimension_numbers = #tpu.dot_dimension_numbers<[1], [0], [0], [1], [0, 0, 1, 1], [], []>} : vector<1x32xf32>, vector<32x128xf32>, vector<1x128xf32> -> vector<1x128xf32>
    %46 = vector.extract_strided_slice %12 {offsets = [1, 0], sizes = [1, 128], strides = [1, 1]} : vector<8x128xf32> to vector<1x128xf32>
    %47 = arith.addf %45, %46 : vector<1x128xf32>
    %48 = arith.mulf %47, %22 : vector<1x128xf32>
    %49 = math.tanh %48 : vector<1x128xf32>
    %50 = arith.mulf %22, %49 : vector<1x128xf32>
    %51 = arith.addf %50, %25 : vector<1x128xf32>
    %52 = vector.extract_strided_slice %51 {offsets = [0, 0], sizes = [1, 32], strides = [1, 1]} : vector<1x128xf32> to vector<1x32xf32>
    %53 = vector.extract_strided_slice %51 {offsets = [0, 32], sizes = [1, 32], strides = [1, 1]} : vector<1x128xf32> to vector<1x32xf32>
    %54 = vector.extract_strided_slice %51 {offsets = [0, 64], sizes = [1, 32], strides = [1, 1]} : vector<1x128xf32> to vector<1x32xf32>
    %55 = vector.extract_strided_slice %51 {offsets = [0, 96], sizes = [1, 32], strides = [1, 1]} : vector<1x128xf32> to vector<1x32xf32>
    %56 = arith.mulf %53, %41 : vector<1x32xf32>
    %57 = arith.mulf %52, %54 : vector<1x32xf32>
    %58 = arith.addf %56, %57 : vector<1x32xf32>
    %59 = math.tanh %58 : vector<1x32xf32>
    %60 = arith.mulf %55, %59 : vector<1x32xf32>
    %c1 = arith.constant 1 : index
    %c0_20 = arith.constant 0 : index
    %61 = vector.load %arg8[%c1, %c0_20] : memref<8x32xf32, #tpu.memory_space<vmem>>, vector<1x32xf32>
    tpu.vector_store %arg8[%c1, %c0_20], %60 {strides = array<i32>} : memref<8x32xf32, #tpu.memory_space<vmem>>, vector<1x32xf32>,
    %cst_21 = arith.constant dense<0.000000e+00> : vector<1x128xf32>
    %62 = tpu.matmul %60, %13, %cst_21 {dimension_numbers = #tpu.dot_dimension_numbers<[1], [0], [0], [1], [0, 0, 1, 1], [], []>} : vector<1x32xf32>, vector<32x128xf32>, vector<1x128xf32> -> vector<1x128xf32>
    %63 = vector.extract_strided_slice %12 {offsets = [2, 0], sizes = [1, 128], strides = [1, 1]} : vector<8x128xf32> to vector<1x128xf32>
    %64 = arith.addf %62, %63 : vector<1x128xf32>
    %65 = arith.mulf %64, %22 : vector<1x128xf32>
    %66 = math.tanh %65 : vector<1x128xf32>
    %67 = arith.mulf %22, %66 : vector<1x128xf32>
    %68 = arith.addf %67, %25 : vector<1x128xf32>
    %69 = vector.extract_strided_slice %68 {offsets = [0, 0], sizes = [1, 32], strides = [1, 1]} : vector<1x128xf32> to vector<1x32xf32>
    %70 = vector.extract_strided_slice %68 {offsets = [0, 32], sizes = [1, 32], strides = [1, 1]} : vector<1x128xf32> to vector<1x32xf32>
    %71 = vector.extract_strided_slice %68 {offsets = [0, 64], sizes = [1, 32], strides = [1, 1]} : vector<1x128xf32> to vector<1x32xf32>
    %72 = vector.extract_strided_slice %68 {offsets = [0, 96], sizes = [1, 32], strides = [1, 1]} : vector<1x128xf32> to vector<1x32xf32>
    %73 = arith.mulf %70, %58 : vector<1x32xf32>
    %74 = arith.mulf %69, %71 : vector<1x32xf32>
    %75 = arith.addf %73, %74 : vector<1x32xf32>
    %76 = math.tanh %75 : vector<1x32xf32>
    %77 = arith.mulf %72, %76 : vector<1x32xf32>
    %c2 = arith.constant 2 : index
    %c0_22 = arith.constant 0 : index
    %78 = vector.load %arg8[%c2, %c0_22] : memref<8x32xf32, #tpu.memory_space<vmem>>, vector<1x32xf32>
    tpu.vector_store %arg8[%c2, %c0_22], %77 {strides = array<i32>} : memref<8x32xf32, #tpu.memory_space<vmem>>, vector<1x32xf32>,
    %cst_23 = arith.constant dense<0.000000e+00> : vector<1x128xf32>
    %79 = tpu.matmul %77, %13, %cst_23 {dimension_numbers = #tpu.dot_dimension_numbers<[1], [0], [0], [1], [0, 0, 1, 1], [], []>} : vector<1x32xf32>, vector<32x128xf32>, vector<1x128xf32> -> vector<1x128xf32>
    %80 = vector.extract_strided_slice %12 {offsets = [3, 0], sizes = [1, 128], strides = [1, 1]} : vector<8x128xf32> to vector<1x128xf32>
    %81 = arith.addf %79, %80 : vector<1x128xf32>
    %82 = arith.mulf %81, %22 : vector<1x128xf32>
    %83 = math.tanh %82 : vector<1x128xf32>
    %84 = arith.mulf %22, %83 : vector<1x128xf32>
    %85 = arith.addf %84, %25 : vector<1x128xf32>
    %86 = vector.extract_strided_slice %85 {offsets = [0, 0], sizes = [1, 32], strides = [1, 1]} : vector<1x128xf32> to vector<1x32xf32>
    %87 = vector.extract_strided_slice %85 {offsets = [0, 32], sizes = [1, 32], strides = [1, 1]} : vector<1x128xf32> to vector<1x32xf32>
    %88 = vector.extract_strided_slice %85 {offsets = [0, 64], sizes = [1, 32], strides = [1, 1]} : vector<1x128xf32> to vector<1x32xf32>
    %89 = vector.extract_strided_slice %85 {offsets = [0, 96], sizes = [1, 32], strides = [1, 1]} : vector<1x128xf32> to vector<1x32xf32>
    %90 = arith.mulf %87, %75 : vector<1x32xf32>
    %91 = arith.mulf %86, %88 : vector<1x32xf32>
    %92 = arith.addf %90, %91 : vector<1x32xf32>
    %93 = math.tanh %92 : vector<1x32xf32>
    %94 = arith.mulf %89, %93 : vector<1x32xf32>
    %c3 = arith.constant 3 : index
    %c0_24 = arith.constant 0 : index
    %95 = vector.load %arg8[%c3, %c0_24] : memref<8x32xf32, #tpu.memory_space<vmem>>, vector<1x32xf32>
    tpu.vector_store %arg8[%c3, %c0_24], %94 {strides = array<i32>} : memref<8x32xf32, #tpu.memory_space<vmem>>, vector<1x32xf32>,
    %cst_25 = arith.constant dense<0.000000e+00> : vector<1x128xf32>
    %96 = tpu.matmul %94, %13, %cst_25 {dimension_numbers = #tpu.dot_dimension_numbers<[1], [0], [0], [1], [0, 0, 1, 1], [], []>} : vector<1x32xf32>, vector<32x128xf32>, vector<1x128xf32> -> vector<1x128xf32>
    %97 = vector.extract_strided_slice %12 {offsets = [4, 0], sizes = [1, 128], strides = [1, 1]} : vector<8x128xf32> to vector<1x128xf32>
    %98 = arith.addf %96, %97 : vector<1x128xf32>
    %99 = arith.mulf %98, %22 : vector<1x128xf32>
    %100 = math.tanh %99 : vector<1x128xf32>
    %101 = arith.mulf %22, %100 : vector<1x128xf32>
    %102 = arith.addf %101, %25 : vector<1x128xf32>
    %103 = vector.extract_strided_slice %102 {offsets = [0, 0], sizes = [1, 32], strides = [1, 1]} : vector<1x128xf32> to vector<1x32xf32>
    %104 = vector.extract_strided_slice %102 {offsets = [0, 32], sizes = [1, 32], strides = [1, 1]} : vector<1x128xf32> to vector<1x32xf32>
    %105 = vector.extract_strided_slice %102 {offsets = [0, 64], sizes = [1, 32], strides = [1, 1]} : vector<1x128xf32> to vector<1x32xf32>
    %106 = vector.extract_strided_slice %102 {offsets = [0, 96], sizes = [1, 32], strides = [1, 1]} : vector<1x128xf32> to vector<1x32xf32>
    %107 = arith.mulf %104, %92 : vector<1x32xf32>
    %108 = arith.mulf %103, %105 : vector<1x32xf32>
    %109 = arith.addf %107, %108 : vector<1x32xf32>
    %110 = math.tanh %109 : vector<1x32xf32>
    %111 = arith.mulf %106, %110 : vector<1x32xf32>
    %c4 = arith.constant 4 : index
    %c0_26 = arith.constant 0 : index
    %112 = vector.load %arg8[%c4, %c0_26] : memref<8x32xf32, #tpu.memory_space<vmem>>, vector<1x32xf32>
    tpu.vector_store %arg8[%c4, %c0_26], %111 {strides = array<i32>} : memref<8x32xf32, #tpu.memory_space<vmem>>, vector<1x32xf32>,
    %cst_27 = arith.constant dense<0.000000e+00> : vector<1x128xf32>
    %113 = tpu.matmul %111, %13, %cst_27 {dimension_numbers = #tpu.dot_dimension_numbers<[1], [0], [0], [1], [0, 0, 1, 1], [], []>} : vector<1x32xf32>, vector<32x128xf32>, vector<1x128xf32> -> vector<1x128xf32>
    %114 = vector.extract_strided_slice %12 {offsets = [5, 0], sizes = [1, 128], strides = [1, 1]} : vector<8x128xf32> to vector<1x128xf32>
    %115 = arith.addf %113, %114 : vector<1x128xf32>
    %116 = arith.mulf %115, %22 : vector<1x128xf32>
    %117 = math.tanh %116 : vector<1x128xf32>
    %118 = arith.mulf %22, %117 : vector<1x128xf32>
    %119 = arith.addf %118, %25 : vector<1x128xf32>
    %120 = vector.extract_strided_slice %119 {offsets = [0, 0], sizes = [1, 32], strides = [1, 1]} : vector<1x128xf32> to vector<1x32xf32>
    %121 = vector.extract_strided_slice %119 {offsets = [0, 32], sizes = [1, 32], strides = [1, 1]} : vector<1x128xf32> to vector<1x32xf32>
    %122 = vector.extract_strided_slice %119 {offsets = [0, 64], sizes = [1, 32], strides = [1, 1]} : vector<1x128xf32> to vector<1x32xf32>
    %123 = vector.extract_strided_slice %119 {offsets = [0, 96], sizes = [1, 32], strides = [1, 1]} : vector<1x128xf32> to vector<1x32xf32>
    %124 = arith.mulf %121, %109 : vector<1x32xf32>
    %125 = arith.mulf %120, %122 : vector<1x32xf32>
    %126 = arith.addf %124, %125 : vector<1x32xf32>
    %127 = math.tanh %126 : vector<1x32xf32>
    %128 = arith.mulf %123, %127 : vector<1x32xf32>
    %c5 = arith.constant 5 : index
    %c0_28 = arith.constant 0 : index
    %129 = vector.load %arg8[%c5, %c0_28] : memref<8x32xf32, #tpu.memory_space<vmem>>, vector<1x32xf32>
    tpu.vector_store %arg8[%c5, %c0_28], %128 {strides = array<i32>} : memref<8x32xf32, #tpu.memory_space<vmem>>, vector<1x32xf32>,
    %cst_29 = arith.constant dense<0.000000e+00> : vector<1x128xf32>
    %130 = tpu.matmul %128, %13, %cst_29 {dimension_numbers = #tpu.dot_dimension_numbers<[1], [0], [0], [1], [0, 0, 1, 1], [], []>} : vector<1x32xf32>, vector<32x128xf32>, vector<1x128xf32> -> vector<1x128xf32>
    %131 = vector.extract_strided_slice %12 {offsets = [6, 0], sizes = [1, 128], strides = [1, 1]} : vector<8x128xf32> to vector<1x128xf32>
    %132 = arith.addf %130, %131 : vector<1x128xf32>
    %133 = arith.mulf %132, %22 : vector<1x128xf32>
    %134 = math.tanh %133 : vector<1x128xf32>
    %135 = arith.mulf %22, %134 : vector<1x128xf32>
    %136 = arith.addf %135, %25 : vector<1x128xf32>
    %137 = vector.extract_strided_slice %136 {offsets = [0, 0], sizes = [1, 32], strides = [1, 1]} : vector<1x128xf32> to vector<1x32xf32>
    %138 = vector.extract_strided_slice %136 {offsets = [0, 32], sizes = [1, 32], strides = [1, 1]} : vector<1x128xf32> to vector<1x32xf32>
    %139 = vector.extract_strided_slice %136 {offsets = [0, 64], sizes = [1, 32], strides = [1, 1]} : vector<1x128xf32> to vector<1x32xf32>
    %140 = vector.extract_strided_slice %136 {offsets = [0, 96], sizes = [1, 32], strides = [1, 1]} : vector<1x128xf32> to vector<1x32xf32>
    %141 = arith.mulf %138, %126 : vector<1x32xf32>
    %142 = arith.mulf %137, %139 : vector<1x32xf32>
    %143 = arith.addf %141, %142 : vector<1x32xf32>
    %144 = math.tanh %143 : vector<1x32xf32>
    %145 = arith.mulf %140, %144 : vector<1x32xf32>
    %c6 = arith.constant 6 : index
    %c0_30 = arith.constant 0 : index
    %146 = vector.load %arg8[%c6, %c0_30] : memref<8x32xf32, #tpu.memory_space<vmem>>, vector<1x32xf32>
    tpu.vector_store %arg8[%c6, %c0_30], %145 {strides = array<i32>} : memref<8x32xf32, #tpu.memory_space<vmem>>, vector<1x32xf32>,
    %cst_31 = arith.constant dense<0.000000e+00> : vector<1x128xf32>
    %147 = tpu.matmul %145, %13, %cst_31 {dimension_numbers = #tpu.dot_dimension_numbers<[1], [0], [0], [1], [0, 0, 1, 1], [], []>} : vector<1x32xf32>, vector<32x128xf32>, vector<1x128xf32> -> vector<1x128xf32>
    %148 = vector.extract_strided_slice %12 {offsets = [7, 0], sizes = [1, 128], strides = [1, 1]} : vector<8x128xf32> to vector<1x128xf32>
    %149 = arith.addf %147, %148 : vector<1x128xf32>
    %150 = arith.mulf %149, %22 : vector<1x128xf32>
    %151 = math.tanh %150 : vector<1x128xf32>
    %152 = arith.mulf %22, %151 : vector<1x128xf32>
    %153 = arith.addf %152, %25 : vector<1x128xf32>
    %154 = vector.extract_strided_slice %153 {offsets = [0, 0], sizes = [1, 32], strides = [1, 1]} : vector<1x128xf32> to vector<1x32xf32>
    %155 = vector.extract_strided_slice %153 {offsets = [0, 32], sizes = [1, 32], strides = [1, 1]} : vector<1x128xf32> to vector<1x32xf32>
    %156 = vector.extract_strided_slice %153 {offsets = [0, 64], sizes = [1, 32], strides = [1, 1]} : vector<1x128xf32> to vector<1x32xf32>
    %157 = vector.extract_strided_slice %153 {offsets = [0, 96], sizes = [1, 32], strides = [1, 1]} : vector<1x128xf32> to vector<1x32xf32>
    %158 = arith.mulf %155, %143 : vector<1x32xf32>
    %159 = arith.mulf %154, %156 : vector<1x32xf32>
    %160 = arith.addf %158, %159 : vector<1x32xf32>
    %161 = math.tanh %160 : vector<1x32xf32>
    %162 = arith.mulf %157, %161 : vector<1x32xf32>
    %c7 = arith.constant 7 : index
    %c0_32 = arith.constant 0 : index
    %163 = vector.load %arg8[%c7, %c0_32] : memref<8x32xf32, #tpu.memory_space<vmem>>, vector<1x32xf32>
    tpu.vector_store %arg8[%c7, %c0_32], %162 {strides = array<i32>} : memref<8x32xf32, #tpu.memory_space<vmem>>, vector<1x32xf32>,
    %c0_33 = arith.constant 0 : index
    %c0_34 = arith.constant 0 : index
    %164 = vector.load %arg8[%c0_33, %c0_34] : memref<8x32xf32, #tpu.memory_space<vmem>>, vector<8x32xf32>
    %c0_35 = arith.constant 0 : index
    %c0_36 = arith.constant 0 : index
    %165 = vector.load %arg5[%c0_35, %c0_36] : memref<32x8xf32, #tpu.memory_space<vmem>>, vector<32x8xf32>
    %cst_37 = arith.constant dense<0.000000e+00> : vector<8x8xf32>
    %166 = tpu.matmul %164, %165, %cst_37 {dimension_numbers = #tpu.dot_dimension_numbers<[1], [0], [0], [1], [0, 0, 1, 1], [], []>} : vector<8x32xf32>, vector<32x8xf32>, vector<8x8xf32> -> vector<8x8xf32>
    %c0_38 = arith.constant 0 : index
    %c0_39 = arith.constant 0 : index
    %167 = vector.load %arg6[%c0_38, %c0_39] : memref<1x8xf32, #tpu.memory_space<vmem>>, vector<1x8xf32>
    %168 = vector.broadcast %167 : vector<1x8xf32> to vector<8x8xf32>
    %169 = arith.addf %166, %168 : vector<8x8xf32>
    %cst_40 = arith.constant dense<0xFF800000> : vector<8xf32>
    %170 = vector.multi_reduction <maximumf>, %169, %cst_40 [1] : vector<8x8xf32> to vector<8xf32>
    %171 = vector.shape_cast %170 : vector<8xf32> to vector<8x1xf32>
    %172 = vector.broadcast %171 : vector<8x1xf32> to vector<8x8xf32>
    %173 = arith.subf %169, %172 : vector<8x8xf32>
    %174 = math.exp %173 : vector<8x8xf32>
    %cst_41 = arith.constant dense<0.000000e+00> : vector<8xf32>
    %175 = vector.multi_reduction <add>, %174, %cst_41 [1] : vector<8x8xf32> to vector<8xf32>
    %176 = vector.shape_cast %175 : vector<8xf32> to vector<8x1xf32>
    %177 = math.log %176 : vector<8x1xf32>
    %178 = arith.addf %171, %177 : vector<8x1xf32>
    %179 = vector.broadcast %178 : vector<8x1xf32> to vector<8x8xf32>
    %180 = arith.subf %169, %179 : vector<8x8xf32>
    %c0_42 = arith.constant 0 : index
    %c0_43 = arith.constant 0 : index
    %181 = vector.load %arg7[%c0_42, %c0_43] : memref<8x8xf32, #tpu.memory_space<vmem>>, vector<8x8xf32>
    tpu.vector_store %arg7[%c0_42, %c0_43], %180 {strides = array<i32>} : memref<8x8xf32, #tpu.memory_space<vmem>>, vector<8x8xf32>,
    return
  }
}

</mosaic_0001>

<llo_original>
// kernel: tpu_custom_call.1
$region0: #{tpu_custom_call.1}
  #allocation0 [shape = 'u32[]', space=smem, size = 0x4, offset = 0x4, fixed_abs, tag = 'smem constant byte address 0x4 - core index']
  #allocation1 [shape = 'u32[144,128]{1,0:T(1,128)}', space=vmem, size = 0x12000, scoped, tag = 'internal scratch']
  #allocation2 [shape = 'f32[8,32]{1,0:T(8,128)}', space=vmem, size = 0x1000, scoped, tag = 'scratch operand']
  %s0 = inlined_call_operand.vmem [shape: s32[8,1], index: 0, kind: input, shape index: {}]
  %s1 = inlined_call_operand.vmem [shape: f32[20,16], index: 1, kind: input, shape index: {}]
  %s2 = inlined_call_operand.vmem [shape: f32[16,128], index: 2, kind: input, shape index: {}]
  %s3 = inlined_call_operand.vmem [shape: f32[32,128], index: 3, kind: input, shape index: {}]
  %s4 = inlined_call_operand.vmem [shape: f32[1,128], index: 4, kind: input, shape index: {}]
  %s5 = inlined_call_operand.vmem [shape: f32[32,8], index: 5, kind: input, shape index: {}]
  %s6 = inlined_call_operand.vmem [shape: f32[1,8], index: 6, kind: input, shape index: {}]
  %s7 = inlined_call_operand.hbm [shape: f32[8,8], index: 7, kind: output, shape index: {}]
  %s8 = sld [smem:[#allocation0]]
  $region38: #{tpu_custom_call.1} parent=0
    _
  %s10 = ssub.s32 1, %s8
  %s11 = scalar_select 0, %s10, %s8
  $region1: #{tpu_custom_call.1} parent=0
    #allocation3 [shape = 'u8[4096]{0}', space=vmem, size = 0x1000, scoped, tag = 'output window, operand 0, single buffered']
    #allocation4 [shape = 's32[1]{0}', space=sflag, size = 0x4, scoped, tag = 'scoped memory for tpu_custom_call.1']
    %12 = vsyncpa [#allocation4], 0
    // Predicated region
    $region2: #{tpu_custom_call.1} parent=1 // pred_check
      _
    $region3: #{tpu_custom_call.1} parent=1 // pred_check_branch
      %14 = sbr.rel (0) target = $region5
    $region4: #{tpu_custom_call.1} parent=1 // pred_region
      _
    $region5: #{tpu_custom_call.1} parent=1 // pred_fallthru
      _
    // Predicated region
    $region6: #{tpu_custom_call.1} parent=1 // pred_check
      _
    $region7: #{tpu_custom_call.1} parent=1 // pred_check_branch
      %16 = sbr.rel (0) target = $region9
    $region8: #{tpu_custom_call.1} parent=1 // pred_region
      _
    $region9: #{tpu_custom_call.1} parent=1 // pred_fallthru
      _
    // Predicated region
    $region10: #{tpu_custom_call.1} parent=1 // pred_check
      _
    $region11: #{tpu_custom_call.1} parent=1 // pred_check_branch
      %18 = sbr.rel (0) target = $region13
    $region12: #{tpu_custom_call.1} parent=1 // pred_region
      _
    $region13: #{tpu_custom_call.1} parent=1 // pred_fallthru
      _
    // Predicated region
    $region14: #{tpu_custom_call.1} parent=1 // pred_check
      _
    $region15: #{tpu_custom_call.1} parent=1 // pred_check_branch
      %20 = sbr.rel (0) target = $region17
    $region16: #{tpu_custom_call.1} parent=1 // pred_region
      _
    $region17: #{tpu_custom_call.1} parent=1 // pred_fallthru
      _
    // Predicated region
    $region18: #{tpu_custom_call.1} parent=1 // pred_check
      _
    $region19: #{tpu_custom_call.1} parent=1 // pred_check_branch
      %22 = sbr.rel (0) target = $region21
    $region20: #{tpu_custom_call.1} parent=1 // pred_region
      _
    $region21: #{tpu_custom_call.1} parent=1 // pred_fallthru
      _
    // Predicated region
    $region22: #{tpu_custom_call.1} parent=1 // pred_check
      _
    $region23: #{tpu_custom_call.1} parent=1 // pred_check_branch
      %24 = sbr.rel (0) target = $region25
    $region24: #{tpu_custom_call.1} parent=1 // pred_region
      _
    $region25: #{tpu_custom_call.1} parent=1 // pred_fallthru
      _
    // Predicated region
    $region26: #{tpu_custom_call.1} parent=1 // pred_check
      _
    $region27: #{tpu_custom_call.1} parent=1 // pred_check_branch
      %26 = sbr.rel (0) target = $region29
    $region28: #{tpu_custom_call.1} parent=1 // pred_region
      _
    $region29: #{tpu_custom_call.1} parent=1 // pred_fallthru
      _
    %v27 = vld [vmem:[%s0] sm:$0xff]
    %v28 = vlaneseq
    %v29 = vand.u32 %v28, 127
    %30 = vset.pattern.permute.xlu0 0
    %31 = vperm.xlu0 %30, %v27
    %v32 = vpop.permute.xlu0 %31
    %vm33 = vcmp.eq.s32.totalorder %v29, %v32
    %v34 = vsel %vm33, 1, 0
    %v35 = vcvt.s32.f32 %v34
    %v36 = vld [vmem:[%s1] sm:$0xff]
    %v37 = vld [vmem:[%s1 + $0x8] sm:$0xff]
    %v38 = vld [vmem:[%s1 + $0x10] sm:$0xf]
    %vm39 = vcmask 162816
    %v41 = vsel %vm39, %v35, 0
    %vm43 = vcmask 1043456
    %v45 = vsel %vm43, %v38, 0
    %47 = vmatprep.subr.mxu0 0.0
    %48 = vmatpush1.msra.mxu0 %v36
    %49 = vmatprep.subr.mxu0 0.0
    %50 = vmatpush1.msra.mxu0 %v37
    %51 = vmatprep.subr.mxu0 0.0
    %52 = vmatpush1.msra.mxu0 %v45
    %53 = vmatprep.subr.mxu0 0.0
    %54 = vmatpush1.msra.mxu0 0.0
    %55 = vmatprep.subr.mxu0 0.0
    %56 = vmatpush1.msra.mxu0 0.0
    %57 = vmatprep.subr.mxu0 0.0
    %58 = vmatpush1.msra.mxu0 0.0
    %59 = vmatprep.subr.mxu0 0.0
    %60 = vmatpush1.msra.mxu0 0.0
    %61 = vmatprep.subr.mxu0 0.0
    %62 = vmatpush1.msra.mxu0 0.0
    %63 = vmatprep.subr.mxu0 0.0
    %64 = vmatpush1.msra.mxu0 0.0
    %65 = vmatprep.subr.mxu0 0.0
    %66 = vmatpush1.msra.mxu0 0.0
    %67 = vmatprep.subr.mxu0 0.0
    %68 = vmatpush1.msra.mxu0 0.0
    %69 = vmatprep.subr.mxu0 0.0
    %70 = vmatpush1.msra.mxu0 0.0
    %71 = vmatprep.subr.mxu0 0.0
    %72 = vmatpush1.msra.mxu0 0.0
    %73 = vmatprep.subr.mxu0 0.0
    %74 = vmatpush1.msra.mxu0 0.0
    %75 = vmatprep.subr.mxu0 0.0
    %76 = vmatpush1.msra.mxu0 0.0
    %77 = vmatprep.subr.mxu0 0.0
    %78 = vmatpush1.msra.mxu0 0.0
    %79 = vmatprep.subr.mxu0 0.0
    %80 = vmatpush1.msra.mxu0 0.0
    %81 = vmatprep.subr.mxu0 0.0
    %82 = vmatpush1.msra.mxu0 0.0
    %83 = vmatprep.subr.mxu0 0.0
    %84 = vmatpush1.msra.mxu0 0.0
    %85 = vmatprep.subr.mxu0 0.0
    %86 = vmatpush1.msra.mxu0 0.0
    %87 = vmatprep.subr.mxu0 0.0
    %88 = vmatpush1.msra.mxu0 0.0
    %89 = vmatprep.subr.mxu0 0.0
    %90 = vmatpush1.msra.mxu0 0.0
    %91 = vmatprep.subr.mxu0 0.0
    %92 = vmatpush1.msra.mxu0 0.0
    %93 = vmatprep.subr.mxu0 0.0
    %94 = vmatpush1.msra.mxu0 0.0
    %95 = vmatprep.subr.mxu0 0.0
    %96 = vmatpush1.msra.mxu0 0.0
    %97 = vmatprep.subr.mxu0 0.0
    %98 = vmatpush1.msra.mxu0 0.0
    %99 = vmatprep.subr.mxu0 0.0
    %100 = vmatpush1.msra.mxu0 0.0
    %101 = vmatprep.subr.mxu0 0.0
    %102 = vmatpush1.msra.mxu0 0.0
    %103 = vmatprep.subr.mxu0 0.0
    %104 = vmatpush1.msra.mxu0 0.0
    %105 = vmatprep.subr.mxu0 0.0
    %106 = vmatpush1.msra.mxu0 0.0
    %107 = vmatprep.subr.mxu0 0.0
    %108 = vmatpush1.msra.mxu0 0.0
    %109 = vmatprep.subr.mxu0 0.0
    %110 = vmatpush1.msra.mxu0 0.0
    %111 = vmatprep.mubr.f32.mxu0 0.0
    %112 = vmatmul.mubr.f32.gmra.mrb[0].mxu0 %v41
    %v113 = vpop.f32.mrb[0].mxu0
    %v114 = vadd.f32 0.0, %v113
    %v115 = vpop.f32.mrb[0].mxu0
    %116 = vdwg.mxu0
    %v117 = vld [vmem:[%s2] sm:$0xff]
    %v118 = vld [vmem:[%s2 + $0x8] sm:$0xff]
    %v119 = vld [vmem:[%s4] sm:$0x1]
    %v121 = vlaneseq
    %v122 = vshrl.u32 %v121, 7
    %v123 = vsub.s32 0, %v122
    %v124 = vrot.slane %v119, %v123
    %vm126 = vcmask 130048
    %v128 = vsel %vm126, %v114, 0
    %130 = vmatprep.subr.mxu0 0.0
    %131 = vmatpush1.msra.mxu0 %v117
    %132 = vmatprep.subr.mxu0 0.0
    %133 = vmatpush1.msra.mxu0 %v118
    %134 = vmatprep.subr.mxu0 0.0
    %135 = vmatpush1.msra.mxu0 0.0
    %136 = vmatprep.subr.mxu0 0.0
    %137 = vmatpush1.msra.mxu0 0.0
    %138 = vmatprep.subr.mxu0 0.0
    %139 = vmatpush1.msra.mxu0 0.0
    %140 = vmatprep.subr.mxu0 0.0
    %141 = vmatpush1.msra.mxu0 0.0
    %142 = vmatprep.subr.mxu0 0.0
    %143 = vmatpush1.msra.mxu0 0.0
    %144 = vmatprep.subr.mxu0 0.0
    %145 = vmatpush1.msra.mxu0 0.0
    %146 = vmatprep.subr.mxu0 0.0
    %147 = vmatpush1.msra.mxu0 0.0
    %148 = vmatprep.subr.mxu0 0.0
    %149 = vmatpush1.msra.mxu0 0.0
    %150 = vmatprep.subr.mxu0 0.0
    %151 = vmatpush1.msra.mxu0 0.0
    %152 = vmatprep.subr.mxu0 0.0
    %153 = vmatpush1.msra.mxu0 0.0
    %154 = vmatprep.subr.mxu0 0.0
    %155 = vmatpush1.msra.mxu0 0.0
    %156 = vmatprep.subr.mxu0 0.0
    %157 = vmatpush1.msra.mxu0 0.0
    %158 = vmatprep.subr.mxu0 0.0
    %159 = vmatpush1.msra.mxu0 0.0
    %160 = vmatprep.subr.mxu0 0.0
    %161 = vmatpush1.msra.mxu0 0.0
    %162 = vmatprep.subr.mxu0 0.0
    %163 = vmatpush1.msra.mxu0 0.0
    %164 = vmatprep.subr.mxu0 0.0
    %165 = vmatpush1.msra.mxu0 0.0
    %166 = vmatprep.subr.mxu0 0.0
    %167 = vmatpush1.msra.mxu0 0.0
    %168 = vmatprep.subr.mxu0 0.0
    %169 = vmatpush1.msra.mxu0 0.0
    %170 = vmatprep.subr.mxu0 0.0
    %171 = vmatpush1.msra.mxu0 0.0
    %172 = vmatprep.subr.mxu0 0.0
    %173 = vmatpush1.msra.mxu0 0.0
    %174 = vmatprep.subr.mxu0 0.0
    %175 = vmatpush1.msra.mxu0 0.0
    %176 = vmatprep.subr.mxu0 0.0
    %177 = vmatpush1.msra.mxu0 0.0
    %178 = vmatprep.subr.mxu0 0.0
    %179 = vmatpush1.msra.mxu0 0.0
    %180 = vmatprep.subr.mxu0 0.0
    %181 = vmatpush1.msra.mxu0 0.0
    %182 = vmatprep.subr.mxu0 0.0
    %183 = vmatpush1.msra.mxu0 0.0
    %184 = vmatprep.subr.mxu0 0.0
    %185 = vmatpush1.msra.mxu0 0.0
    %186 = vmatprep.subr.mxu0 0.0
    %187 = vmatpush1.msra.mxu0 0.0
    %188 = vmatprep.subr.mxu0 0.0
    %189 = vmatpush1.msra.mxu0 0.0
    %190 = vmatprep.subr.mxu0 0.0
    %191 = vmatpush1.msra.mxu0 0.0
    %192 = vmatprep.subr.mxu0 0.0
    %193 = vmatpush1.msra.mxu0 0.0
    %194 = vmatprep.mubr.f32.mxu0 0.0
    %195 = vmatmul.mubr.f32.gmra.mrb[0].mxu0 %v128
    %v196 = vpop.f32.mrb[0].mxu0
    %v197 = vadd.f32 %v124, %v196
    %v198 = vpop.f32.mrb[0].mxu0
    %199 = vdwg.mxu0
    %v200 = vld [vmem:[%s3] sm:$0xff]
    %v201 = vld [vmem:[%s3 + $0x8] sm:$0xff]
    %v202 = vld [vmem:[%s3 + $0x10] sm:$0xff]
    %v203 = vld [vmem:[%s3 + $0x18] sm:$0xff]
    %vm204 = vcmp.ge.s32.totalorder %v29, 64
    %vm205 = vcmp.lt.s32.totalorder %v29, 96
    %vm206 = vmand %vm204, %vm205
    %v207 = vsel %vm206, 1.0, 0.5
    %v208 = vsel %vm206, 0.0, 0.5
    %vm209 = vcmask 261120
    %v211 = vsel %vm209, 0.0, 0
    %213 = vmatprep.subr.mxu0 0.0
    %214 = vmatpush1.msra.mxu0 %v200
    %215 = vmatprep.subr.mxu0 0.0
    %216 = vmatpush1.msra.mxu0 %v201
    %217 = vmatprep.subr.mxu0 0.0
    %218 = vmatpush1.msra.mxu0 %v202
    %219 = vmatprep.subr.mxu0 0.0
    %220 = vmatpush1.msra.mxu0 %v203
    %221 = vmatprep.subr.mxu0 0.0
    %222 = vmatpush1.msra.mxu0 0.0
    %223 = vmatprep.subr.mxu0 0.0
    %224 = vmatpush1.msra.mxu0 0.0
    %225 = vmatprep.subr.mxu0 0.0
    %226 = vmatpush1.msra.mxu0 0.0
    %227 = vmatprep.subr.mxu0 0.0
    %228 = vmatpush1.msra.mxu0 0.0
    %229 = vmatprep.subr.mxu0 0.0
    %230 = vmatpush1.msra.mxu0 0.0
    %231 = vmatprep.subr.mxu0 0.0
    %232 = vmatpush1.msra.mxu0 0.0
    %233 = vmatprep.subr.mxu0 0.0
    %234 = vmatpush1.msra.mxu0 0.0
    %235 = vmatprep.subr.mxu0 0.0
    %236 = vmatpush1.msra.mxu0 0.0
    %237 = vmatprep.subr.mxu0 0.0
    %238 = vmatpush1.msra.mxu0 0.0
    %239 = vmatprep.subr.mxu0 0.0
    %240 = vmatpush1.msra.mxu0 0.0
    %241 = vmatprep.subr.mxu0 0.0
    %242 = vmatpush1.msra.mxu0 0.0
    %243 = vmatprep.subr.mxu0 0.0
    %244 = vmatpush1.msra.mxu0 0.0
    %245 = vmatprep.subr.mxu0 0.0
    %246 = vmatpush1.msra.mxu0 0.0
    %247 = vmatprep.subr.mxu0 0.0
    %248 = vmatpush1.msra.mxu0 0.0
    %249 = vmatprep.subr.mxu0 0.0
    %250 = vmatpush1.msra.mxu0 0.0
    %251 = vmatprep.subr.mxu0 0.0
    %252 = vmatpush1.msra.mxu0 0.0
    %253 = vmatprep.subr.mxu0 0.0
    %254 = vmatpush1.msra.mxu0 0.0
    %255 = vmatprep.subr.mxu0 0.0
    %256 = vmatpush1.msra.mxu0 0.0
    %257 = vmatprep.subr.mxu0 0.0
    %258 = vmatpush1.msra.mxu0 0.0
    %259 = vmatprep.subr.mxu0 0.0
    %260 = vmatpush1.msra.mxu0 0.0
    %261 = vmatprep.subr.mxu0 0.0
    %262 = vmatpush1.msra.mxu0 0.0
    %263 = vmatprep.subr.mxu0 0.0
    %264 = vmatpush1.msra.mxu0 0.0
    %265 = vmatprep.subr.mxu0 0.0
    %266 = vmatpush1.msra.mxu0 0.0
    %267 = vmatprep.subr.mxu0 0.0
    %268 = vmatpush1.msra.mxu0 0.0
    %269 = vmatprep.subr.mxu0 0.0
    %270 = vmatpush1.msra.mxu0 0.0
    %271 = vmatprep.subr.mxu0 0.0
    %272 = vmatpush1.msra.mxu0 0.0
    %273 = vmatprep.subr.mxu0 0.0
    %274 = vmatpush1.msra.mxu0 0.0
    %275 = vmatprep.subr.mxu0 0.0
    %276 = vmatpush1.msra.mxu0 0.0
    %277 = vmatprep.mubr.f32.mxu0 0.0
    %278 = vmatmul.mubr.f32.gmra.mrb[0].mxu0 %v211
    %v279 = vpop.f32.mrb[0].mxu0
    %v280 = vadd.f32 %v197, %v279
    %v281 = vpop.f32.mrb[0].mxu0
    %282 = vdwg.mxu0
    %v283 = vmul.f32 %v280, %v207
    %v284 = vtanh.pop %v283
    %v285 = vmul.f32 %v207, %v284
    %v286 = vadd.f32 %v285, %v208
    %v287 = vmul.f32 %v286, 0.0
    %289 = vrot.lane.b32.xlu0 %v286, 64
    %v290 = vpop.permute.xlu0 %289
    %v292 = vmul.f32 %v286, %v290
    %294 = vrot.lane.b32.xlu0 %v292, 32
    %v295 = vpop.permute.xlu0 %294
    %v297 = vadd.f32 %v287, %v295
    %v298 = vtanh.pop %v297
    %300 = vrot.lane.b32.xlu0 %v298, 64
    %v301 = vpop.permute.xlu0 %300
    %v303 = vmul.f32 %v286, %v301
    %305 = vrot.lane.b32.xlu0 %v303, 32
    %v306 = vpop.permute.xlu0 %305
    %vm308 = vcmask 253952
    %309 = vst.msk [vmem:[#allocation2] sm:$0x1] %vm308, %v306
    %v311 = vrot.slane %v197, 1
    %v313 = vsel %vm209, %v306, 0
    %315 = vmatprep.subr.mxu0 0.0
    %316 = vmatpush1.msra.mxu0 %v200
    %317 = vmatprep.subr.mxu0 0.0
    %318 = vmatpush1.msra.mxu0 %v201
    %319 = vmatprep.subr.mxu0 0.0
    %320 = vmatpush1.msra.mxu0 %v202
    %321 = vmatprep.subr.mxu0 0.0
    %322 = vmatpush1.msra.mxu0 %v203
    %323 = vmatprep.subr.mxu0 0.0
    %324 = vmatpush1.msra.mxu0 0.0
    %325 = vmatprep.subr.mxu0 0.0
    %326 = vmatpush1.msra.mxu0 0.0
    %327 = vmatprep.subr.mxu0 0.0
    %328 = vmatpush1.msra.mxu0 0.0
    %329 = vmatprep.subr.mxu0 0.0
    %330 = vmatpush1.msra.mxu0 0.0
    %331 = vmatprep.subr.mxu0 0.0
    %332 = vmatpush1.msra.mxu0 0.0
    %333 = vmatprep.subr.mxu0 0.0
    %334 = vmatpush1.msra.mxu0 0.0
    %335 = vmatprep.subr.mxu0 0.0
    %336 = vmatpush1.msra.mxu0 0.0
    %337 = vmatprep.subr.mxu0 0.0
    %338 = vmatpush1.msra.mxu0 0.0
    %339 = vmatprep.subr.mxu0 0.0
    %340 = vmatpush1.msra.mxu0 0.0
    %341 = vmatprep.subr.mxu0 0.0
    %342 = vmatpush1.msra.mxu0 0.0
    %343 = vmatprep.subr.mxu0 0.0
    %344 = vmatpush1.msra.mxu0 0.0
    %345 = vmatprep.subr.mxu0 0.0
    %346 = vmatpush1.msra.mxu0 0.0
    %347 = vmatprep.subr.mxu0 0.0
    %348 = vmatpush1.msra.mxu0 0.0
    %349 = vmatprep.subr.mxu0 0.0
    %350 = vmatpush1.msra.mxu0 0.0
    %351 = vmatprep.subr.mxu0 0.0
    %352 = vmatpush1.msra.mxu0 0.0
    %353 = vmatprep.subr.mxu0 0.0
    %354 = vmatpush1.msra.mxu0 0.0
    %355 = vmatprep.subr.mxu0 0.0
    %356 = vmatpush1.msra.mxu0 0.0
    %357 = vmatprep.subr.mxu0 0.0
    %358 = vmatpush1.msra.mxu0 0.0
    %359 = vmatprep.subr.mxu0 0.0
    %360 = vmatpush1.msra.mxu0 0.0
    %361 = vmatprep.subr.mxu0 0.0
    %362 = vmatpush1.msra.mxu0 0.0
    %363 = vmatprep.subr.mxu0 0.0
    %364 = vmatpush1.msra.mxu0 0.0
    %365 = vmatprep.subr.mxu0 0.0
    %366 = vmatpush1.msra.mxu0 0.0
    %367 = vmatprep.subr.mxu0 0.0
    %368 = vmatpush1.msra.mxu0 0.0
    %369 = vmatprep.subr.mxu0 0.0
    %370 = vmatpush1.msra.mxu0 0.0
    %371 = vmatprep.subr.mxu0 0.0
    %372 = vmatpush1.msra.mxu0 0.0
    %373 = vmatprep.subr.mxu0 0.0
    %374 = vmatpush1.msra.mxu0 0.0
    %375 = vmatprep.subr.mxu0 0.0
    %376 = vmatpush1.msra.mxu0 0.0
    %377 = vmatprep.subr.mxu0 0.0
    %378 = vmatpush1.msra.mxu0 0.0
    %379 = vmatprep.mubr.f32.mxu0 0.0
    %380 = vmatmul.mubr.f32.gmra.mrb[0].mxu0 %v313
    %v381 = vpop.f32.mrb[0].mxu0
    %v382 = vadd.f32 %v311, %v381
    %v383 = vpop.f32.mrb[0].mxu0
    %384 = vdwg.mxu0
    %v385 = vmul.f32 %v382, %v207
    %v386 = vtanh.pop %v385
    %v387 = vmul.f32 %v207, %v386
    %v388 = vadd.f32 %v387, %v208
    %v389 = vmul.f32 %v388, %v297
    %391 = vrot.lane.b32.xlu0 %v388, 64
    %v392 = vpop.permute.xlu0 %391
    %v394 = vmul.f32 %v388, %v392
    %396 = vrot.lane.b32.xlu0 %v394, 32
    %v397 = vpop.permute.xlu0 %396
    %v399 = vadd.f32 %v389, %v397
    %v400 = vtanh.pop %v399
    %402 = vrot.lane.b32.xlu0 %v400, 64
    %v403 = vpop.permute.xlu0 %402
    %v405 = vmul.f32 %v388, %v403
    %407 = vrot.lane.b32.xlu0 %v405, 32
    %v408 = vpop.permute.xlu0 %407
    %410 = vst.msk [vmem:[#allocation2 + $0x1] sm:$0x1] %vm308, %v408
    %v411 = vrot.slane %v197, 2
    %v413 = vsel %vm209, %v408, 0
    %415 = vmatprep.subr.mxu0 0.0
    %416 = vmatpush1.msra.mxu0 %v200
    %417 = vmatprep.subr.mxu0 0.0
    %418 = vmatpush1.msra.mxu0 %v201
    %419 = vmatprep.subr.mxu0 0.0
    %420 = vmatpush1.msra.mxu0 %v202
    %421 = vmatprep.subr.mxu0 0.0
    %422 = vmatpush1.msra.mxu0 %v203
    %423 = vmatprep.subr.mxu0 0.0
    %424 = vmatpush1.msra.mxu0 0.0
    %425 = vmatprep.subr.mxu0 0.0
    %426 = vmatpush1.msra.mxu0 0.0
    %427 = vmatprep.subr.mxu0 0.0
    %428 = vmatpush1.msra.mxu0 0.0
    %429 = vmatprep.subr.mxu0 0.0
    %430 = vmatpush1.msra.mxu0 0.0
    %431 = vmatprep.subr.mxu0 0.0
    %432 = vmatpush1.msra.mxu0 0.0
    %433 = vmatprep.subr.mxu0 0.0
    %434 = vmatpush1.msra.mxu0 0.0
    %435 = vmatprep.subr.mxu0 0.0
    %436 = vmatpush1.msra.mxu0 0.0
    %437 = vmatprep.subr.mxu0 0.0
    %438 = vmatpush1.msra.mxu0 0.0
    %439 = vmatprep.subr.mxu0 0.0
    %440 = vmatpush1.msra.mxu0 0.0
    %441 = vmatprep.subr.mxu0 0.0
    %442 = vmatpush1.msra.mxu0 0.0
    %443 = vmatprep.subr.mxu0 0.0
    %444 = vmatpush1.msra.mxu0 0.0
    %445 = vmatprep.subr.mxu0 0.0
    %446 = vmatpush1.msra.mxu0 0.0
    %447 = vmatprep.subr.mxu0 0.0
    %448 = vmatpush1.msra.mxu0 0.0
    %449 = vmatprep.subr.mxu0 0.0
    %450 = vmatpush1.msra.mxu0 0.0
    %451 = vmatprep.subr.mxu0 0.0
    %452 = vmatpush1.msra.mxu0 0.0
    %453 = vmatprep.subr.mxu0 0.0
    %454 = vmatpush1.msra.mxu0 0.0
    %455 = vmatprep.subr.mxu0 0.0
    %456 = vmatpush1.msra.mxu0 0.0
    %457 = vmatprep.subr.mxu0 0.0
    %458 = vmatpush1.msra.mxu0 0.0
    %459 = vmatprep.subr.mxu0 0.0
    %460 = vmatpush1.msra.mxu0 0.0
    %461 = vmatprep.subr.mxu0 0.0
    %462 = vmatpush1.msra.mxu0 0.0
    %463 = vmatprep.subr.mxu0 0.0
    %464 = vmatpush1.msra.mxu0 0.0
    %465 = vmatprep.subr.mxu0 0.0
    %466 = vmatpush1.msra.mxu0 0.0
    %467 = vmatprep.subr.mxu0 0.0
    %468 = vmatpush1.msra.mxu0 0.0
    %469 = vmatprep.subr.mxu0 0.0
    %470 = vmatpush1.msra.mxu0 0.0
    %471 = vmatprep.subr.mxu0 0.0
    %472 = vmatpush1.msra.mxu0 0.0
    %473 = vmatprep.subr.mxu0 0.0
    %474 = vmatpush1.msra.mxu0 0.0
    %475 = vmatprep.subr.mxu0 0.0
    %476 = vmatpush1.msra.mxu0 0.0
    %477 = vmatprep.subr.mxu0 0.0
    %478 = vmatpush1.msra.mxu0 0.0
    %479 = vmatprep.mubr.f32.mxu0 0.0
    %480 = vmatmul.mubr.f32.gmra.mrb[0].mxu0 %v413
    %v481 = vpop.f32.mrb[0].mxu0
    %v482 = vadd.f32 %v411, %v481
    %v483 = vpop.f32.mrb[0].mxu0
    %484 = vdwg.mxu0
    %v485 = vmul.f32 %v482, %v207
    %v486 = vtanh.pop %v485
    %v487 = vmul.f32 %v207, %v486
    %v488 = vadd.f32 %v487, %v208
    %v489 = vmul.f32 %v488, %v399
    %491 = vrot.lane.b32.xlu0 %v488, 64
    %v492 = vpop.permute.xlu0 %491
    %v494 = vmul.f32 %v488, %v492
    %496 = vrot.lane.b32.xlu0 %v494, 32
    %v497 = vpop.permute.xlu0 %496
    %v499 = vadd.f32 %v489, %v497
    %v500 = vtanh.pop %v499
    %502 = vrot.lane.b32.xlu0 %v500, 64
    %v503 = vpop.permute.xlu0 %502
    %v505 = vmul.f32 %v488, %v503
    %507 = vrot.lane.b32.xlu0 %v505, 32
    %v508 = vpop.permute.xlu0 %507
    %510 = vst.msk [vmem:[#allocation2 + $0x2] sm:$0x1] %vm308, %v508
    %v511 = vrot.slane %v197, 3
    %v513 = vsel %vm209, %v508, 0
    %515 = vmatprep.subr.mxu0 0.0
    %516 = vmatpush1.msra.mxu0 %v200
    %517 = vmatprep.subr.mxu0 0.0
    %518 = vmatpush1.msra.mxu0 %v201
    %519 = vmatprep.subr.mxu0 0.0
    %520 = vmatpush1.msra.mxu0 %v202
    %521 = vmatprep.subr.mxu0 0.0
    %522 = vmatpush1.msra.mxu0 %v203
    %523 = vmatprep.subr.mxu0 0.0
    %524 = vmatpush1.msra.mxu0 0.0
    %525 = vmatprep.subr.mxu0 0.0
    %526 = vmatpush1.msra.mxu0 0.0
    %527 = vmatprep.subr.mxu0 0.0
    %528 = vmatpush1.msra.mxu0 0.0
    %529 = vmatprep.subr.mxu0 0.0
    %530 = vmatpush1.msra.mxu0 0.0
    %531 = vmatprep.subr.mxu0 0.0
    %532 = vmatpush1.msra.mxu0 0.0
    %533 = vmatprep.subr.mxu0 0.0
    %534 = vmatpush1.msra.mxu0 0.0
    %535 = vmatprep.subr.mxu0 0.0
    %536 = vmatpush1.msra.mxu0 0.0
    %537 = vmatprep.subr.mxu0 0.0
    %538 = vmatpush1.msra.mxu0 0.0
    %539 = vmatprep.subr.mxu0 0.0
    %540 = vmatpush1.msra.mxu0 0.0
    %541 = vmatprep.subr.mxu0 0.0
    %542 = vmatpush1.msra.mxu0 0.0
    %543 = vmatprep.subr.mxu0 0.0
    %544 = vmatpush1.msra.mxu0 0.0
    %545 = vmatprep.subr.mxu0 0.0
    %546 = vmatpush1.msra.mxu0 0.0
    %547 = vmatprep.subr.mxu0 0.0
    %548 = vmatpush1.msra.mxu0 0.0
    %549 = vmatprep.subr.mxu0 0.0
    %550 = vmatpush1.msra.mxu0 0.0
    %551 = vmatprep.subr.mxu0 0.0
    %552 = vmatpush1.msra.mxu0 0.0
    %553 = vmatprep.subr.mxu0 0.0
    %554 = vmatpush1.msra.mxu0 0.0
    %555 = vmatprep.subr.mxu0 0.0
    %556 = vmatpush1.msra.mxu0 0.0
    %557 = vmatprep.subr.mxu0 0.0
    %558 = vmatpush1.msra.mxu0 0.0
    %559 = vmatprep.subr.mxu0 0.0
    %560 = vmatpush1.msra.mxu0 0.0
    %561 = vmatprep.subr.mxu0 0.0
    %562 = vmatpush1.msra.mxu0 0.0
    %563 = vmatprep.subr.mxu0 0.0
    %564 = vmatpush1.msra.mxu0 0.0
    %565 = vmatprep.subr.mxu0 0.0
    %566 = vmatpush1.msra.mxu0 0.0
    %567 = vmatprep.subr.mxu0 0.0
    %568 = vmatpush1.msra.mxu0 0.0
    %569 = vmatprep.subr.mxu0 0.0
    %570 = vmatpush1.msra.mxu0 0.0
    %571 = vmatprep.subr.mxu0 0.0
    %572 = vmatpush1.msra.mxu0 0.0
    %573 = vmatprep.subr.mxu0 0.0
    %574 = vmatpush1.msra.mxu0 0.0
    %575 = vmatprep.subr.mxu0 0.0
    %576 = vmatpush1.msra.mxu0 0.0
    %577 = vmatprep.subr.mxu0 0.0
    %578 = vmatpush1.msra.mxu0 0.0
    %579 = vmatprep.mubr.f32.mxu0 0.0
    %580 = vmatmul.mubr.f32.gmra.mrb[0].mxu0 %v513
    %v581 = vpop.f32.mrb[0].mxu0
    %v582 = vadd.f32 %v511, %v581
    %v583 = vpop.f32.mrb[0].mxu0
    %584 = vdwg.mxu0
    %v585 = vmul.f32 %v582, %v207
    %v586 = vtanh.pop %v585
    %v587 = vmul.f32 %v207, %v586
    %v588 = vadd.f32 %v587, %v208
    %v589 = vmul.f32 %v588, %v499
    %591 = vrot.lane.b32.xlu0 %v588, 64
    %v592 = vpop.permute.xlu0 %591
    %v594 = vmul.f32 %v588, %v592
    %596 = vrot.lane.b32.xlu0 %v594, 32
    %v597 = vpop.permute.xlu0 %596
    %v599 = vadd.f32 %v589, %v597
    %v600 = vtanh.pop %v599
    %602 = vrot.lane.b32.xlu0 %v600, 64
    %v603 = vpop.permute.xlu0 %602
    %v605 = vmul.f32 %v588, %v603
    %607 = vrot.lane.b32.xlu0 %v605, 32
    %v608 = vpop.permute.xlu0 %607
    %610 = vst.msk [vmem:[#allocation2 + $0x3] sm:$0x1] %vm308, %v608
    %v611 = vrot.slane %v197, 4
    %v613 = vsel %vm209, %v608, 0
    %615 = vmatprep.subr.mxu0 0.0
    %616 = vmatpush1.msra.mxu0 %v200
    %617 = vmatprep.subr.mxu0 0.0
    %618 = vmatpush1.msra.mxu0 %v201
    %619 = vmatprep.subr.mxu0 0.0
    %620 = vmatpush1.msra.mxu0 %v202
    %621 = vmatprep.subr.mxu0 0.0
    %622 = vmatpush1.msra.mxu0 %v203
    %623 = vmatprep.subr.mxu0 0.0
    %624 = vmatpush1.msra.mxu0 0.0
    %625 = vmatprep.subr.mxu0 0.0
    %626 = vmatpush1.msra.mxu0 0.0
    %627 = vmatprep.subr.mxu0 0.0
    %628 = vmatpush1.msra.mxu0 0.0
    %629 = vmatprep.subr.mxu0 0.0
    %630 = vmatpush1.msra.mxu0 0.0
    %631 = vmatprep.subr.mxu0 0.0
    %632 = vmatpush1.msra.mxu0 0.0
    %633 = vmatprep.subr.mxu0 0.0
    %634 = vmatpush1.msra.mxu0 0.0
    %635 = vmatprep.subr.mxu0 0.0
    %636 = vmatpush1.msra.mxu0 0.0
    %637 = vmatprep.subr.mxu0 0.0
    %638 = vmatpush1.msra.mxu0 0.0
    %639 = vmatprep.subr.mxu0 0.0
    %640 = vmatpush1.msra.mxu0 0.0
    %641 = vmatprep.subr.mxu0 0.0
    %642 = vmatpush1.msra.mxu0 0.0
    %643 = vmatprep.subr.mxu0 0.0
    %644 = vmatpush1.msra.mxu0 0.0
    %645 = vmatprep.subr.mxu0 0.0
    %646 = vmatpush1.msra.mxu0 0.0
    %647 = vmatprep.subr.mxu0 0.0
    %648 = vmatpush1.msra.mxu0 0.0
    %649 = vmatprep.subr.mxu0 0.0
    %650 = vmatpush1.msra.mxu0 0.0
    %651 = vmatprep.subr.mxu0 0.0
    %652 = vmatpush1.msra.mxu0 0.0
    %653 = vmatprep.subr.mxu0 0.0
    %654 = vmatpush1.msra.mxu0 0.0
    %655 = vmatprep.subr.mxu0 0.0
    %656 = vmatpush1.msra.mxu0 0.0
    %657 = vmatprep.subr.mxu0 0.0
    %658 = vmatpush1.msra.mxu0 0.0
    %659 = vmatprep.subr.mxu0 0.0
    %660 = vmatpush1.msra.mxu0 0.0
    %661 = vmatprep.subr.mxu0 0.0
    %662 = vmatpush1.msra.mxu0 0.0
    %663 = vmatprep.subr.mxu0 0.0
    %664 = vmatpush1.msra.mxu0 0.0
    %665 = vmatprep.subr.mxu0 0.0
    %666 = vmatpush1.msra.mxu0 0.0
    %667 = vmatprep.subr.mxu0 0.0
    %668 = vmatpush1.msra.mxu0 0.0
    %669 = vmatprep.subr.mxu0 0.0
    %670 = vmatpush1.msra.mxu0 0.0
    %671 = vmatprep.subr.mxu0 0.0
    %672 = vmatpush1.msra.mxu0 0.0
    %673 = vmatprep.subr.mxu0 0.0
    %674 = vmatpush1.msra.mxu0 0.0
    %675 = vmatprep.subr.mxu0 0.0
    %676 = vmatpush1.msra.mxu0 0.0
    %677 = vmatprep.subr.mxu0 0.0
    %678 = vmatpush1.msra.mxu0 0.0
    %679 = vmatprep.mubr.f32.mxu0 0.0
    %680 = vmatmul.mubr.f32.gmra.mrb[0].mxu0 %v613
    %v681 = vpop.f32.mrb[0].mxu0
    %v682 = vadd.f32 %v611, %v681
    %v683 = vpop.f32.mrb[0].mxu0
    %684 = vdwg.mxu0
    %v685 = vmul.f32 %v682, %v207
    %v686 = vtanh.pop %v685
    %v687 = vmul.f32 %v207, %v686
    %v688 = vadd.f32 %v687, %v208
    %v689 = vmul.f32 %v688, %v599
    %691 = vrot.lane.b32.xlu0 %v688, 64
    %v692 = vpop.permute.xlu0 %691
    %v694 = vmul.f32 %v688, %v692
    %696 = vrot.lane.b32.xlu0 %v694, 32
    %v697 = vpop.permute.xlu0 %696
    %v699 = vadd.f32 %v689, %v697
    %v700 = vtanh.pop %v699
    %702 = vrot.lane.b32.xlu0 %v700, 64
    %v703 = vpop.permute.xlu0 %702
    %v705 = vmul.f32 %v688, %v703
    %707 = vrot.lane.b32.xlu0 %v705, 32
    %v708 = vpop.permute.xlu0 %707
    %710 = vst.msk [vmem:[#allocation2 + $0x4] sm:$0x1] %vm308, %v708
    %v711 = vrot.slane %v197, 5
    %v713 = vsel %vm209, %v708, 0
    %715 = vmatprep.subr.mxu0 0.0
    %716 = vmatpush1.msra.mxu0 %v200
    %717 = vmatprep.subr.mxu0 0.0
    %718 = vmatpush1.msra.mxu0 %v201
    %719 = vmatprep.subr.mxu0 0.0
    %720 = vmatpush1.msra.mxu0 %v202
    %721 = vmatprep.subr.mxu0 0.0
    %722 = vmatpush1.msra.mxu0 %v203
    %723 = vmatprep.subr.mxu0 0.0
    %724 = vmatpush1.msra.mxu0 0.0
    %725 = vmatprep.subr.mxu0 0.0
    %726 = vmatpush1.msra.mxu0 0.0
    %727 = vmatprep.subr.mxu0 0.0
    %728 = vmatpush1.msra.mxu0 0.0
    %729 = vmatprep.subr.mxu0 0.0
    %730 = vmatpush1.msra.mxu0 0.0
    %731 = vmatprep.subr.mxu0 0.0
    %732 = vmatpush1.msra.mxu0 0.0
    %733 = vmatprep.subr.mxu0 0.0
    %734 = vmatpush1.msra.mxu0 0.0
    %735 = vmatprep.subr.mxu0 0.0
    %736 = vmatpush1.msra.mxu0 0.0
    %737 = vmatprep.subr.mxu0 0.0
    %738 = vmatpush1.msra.mxu0 0.0
    %739 = vmatprep.subr.mxu0 0.0
    %740 = vmatpush1.msra.mxu0 0.0
    %741 = vmatprep.subr.mxu0 0.0
    %742 = vmatpush1.msra.mxu0 0.0
    %743 = vmatprep.subr.mxu0 0.0
    %744 = vmatpush1.msra.mxu0 0.0
    %745 = vmatprep.subr.mxu0 0.0
    %746 = vmatpush1.msra.mxu0 0.0
    %747 = vmatprep.subr.mxu0 0.0
    %748 = vmatpush1.msra.mxu0 0.0
    %749 = vmatprep.subr.mxu0 0.0
    %750 = vmatpush1.msra.mxu0 0.0
    %751 = vmatprep.subr.mxu0 0.0
    %752 = vmatpush1.msra.mxu0 0.0
    %753 = vmatprep.subr.mxu0 0.0
    %754 = vmatpush1.msra.mxu0 0.0
    %755 = vmatprep.subr.mxu0 0.0
    %756 = vmatpush1.msra.mxu0 0.0
    %757 = vmatprep.subr.mxu0 0.0
    %758 = vmatpush1.msra.mxu0 0.0
    %759 = vmatprep.subr.mxu0 0.0
    %760 = vmatpush1.msra.mxu0 0.0
    %761 = vmatprep.subr.mxu0 0.0
    %762 = vmatpush1.msra.mxu0 0.0
    %763 = vmatprep.subr.mxu0 0.0
    %764 = vmatpush1.msra.mxu0 0.0
    %765 = vmatprep.subr.mxu0 0.0
    %766 = vmatpush1.msra.mxu0 0.0
    %767 = vmatprep.subr.mxu0 0.0
    %768 = vmatpush1.msra.mxu0 0.0
    %769 = vmatprep.subr.mxu0 0.0
    %770 = vmatpush1.msra.mxu0 0.0
    %771 = vmatprep.subr.mxu0 0.0
    %772 = vmatpush1.msra.mxu0 0.0
    %773 = vmatprep.subr.mxu0 0.0
    %774 = vmatpush1.msra.mxu0 0.0
    %775 = vmatprep.subr.mxu0 0.0
    %776 = vmatpush1.msra.mxu0 0.0
    %777 = vmatprep.subr.mxu0 0.0
    %778 = vmatpush1.msra.mxu0 0.0
    %779 = vmatprep.mubr.f32.mxu0 0.0
    %780 = vmatmul.mubr.f32.gmra.mrb[0].mxu0 %v713
    %v781 = vpop.f32.mrb[0].mxu0
    %v782 = vadd.f32 %v711, %v781
    %v783 = vpop.f32.mrb[0].mxu0
    %784 = vdwg.mxu0
    %v785 = vmul.f32 %v782, %v207
    %v786 = vtanh.pop %v785
    %v787 = vmul.f32 %v207, %v786
    %v788 = vadd.f32 %v787, %v208
    %v789 = vmul.f32 %v788, %v699
    %791 = vrot.lane.b32.xlu0 %v788, 64
    %v792 = vpop.permute.xlu0 %791
    %v794 = vmul.f32 %v788, %v792
    %796 = vrot.lane.b32.xlu0 %v794, 32
    %v797 = vpop.permute.xlu0 %796
    %v799 = vadd.f32 %v789, %v797
    %v800 = vtanh.pop %v799
    %802 = vrot.lane.b32.xlu0 %v800, 64
    %v803 = vpop.permute.xlu0 %802
    %v805 = vmul.f32 %v788, %v803
    %807 = vrot.lane.b32.xlu0 %v805, 32
    %v808 = vpop.permute.xlu0 %807
    %810 = vst.msk [vmem:[#allocation2 + $0x5] sm:$0x1] %vm308, %v808
    %v811 = vrot.slane %v197, 6
    %v813 = vsel %vm209, %v808, 0
    %815 = vmatprep.subr.mxu0 0.0
    %816 = vmatpush1.msra.mxu0 %v200
    %817 = vmatprep.subr.mxu0 0.0
    %818 = vmatpush1.msra.mxu0 %v201
    %819 = vmatprep.subr.mxu0 0.0
    %820 = vmatpush1.msra.mxu0 %v202
    %821 = vmatprep.subr.mxu0 0.0
    %822 = vmatpush1.msra.mxu0 %v203
    %823 = vmatprep.subr.mxu0 0.0
    %824 = vmatpush1.msra.mxu0 0.0
    %825 = vmatprep.subr.mxu0 0.0
    %826 = vmatpush1.msra.mxu0 0.0
    %827 = vmatprep.subr.mxu0 0.0
    %828 = vmatpush1.msra.mxu0 0.0
    %829 = vmatprep.subr.mxu0 0.0
    %830 = vmatpush1.msra.mxu0 0.0
    %831 = vmatprep.subr.mxu0 0.0
    %832 = vmatpush1.msra.mxu0 0.0
    %833 = vmatprep.subr.mxu0 0.0
    %834 = vmatpush1.msra.mxu0 0.0
    %835 = vmatprep.subr.mxu0 0.0
    %836 = vmatpush1.msra.mxu0 0.0
    %837 = vmatprep.subr.mxu0 0.0
    %838 = vmatpush1.msra.mxu0 0.0
    %839 = vmatprep.subr.mxu0 0.0
    %840 = vmatpush1.msra.mxu0 0.0
    %841 = vmatprep.subr.mxu0 0.0
    %842 = vmatpush1.msra.mxu0 0.0
    %843 = vmatprep.subr.mxu0 0.0
    %844 = vmatpush1.msra.mxu0 0.0
    %845 = vmatprep.subr.mxu0 0.0
    %846 = vmatpush1.msra.mxu0 0.0
    %847 = vmatprep.subr.mxu0 0.0
    %848 = vmatpush1.msra.mxu0 0.0
    %849 = vmatprep.subr.mxu0 0.0
    %850 = vmatpush1.msra.mxu0 0.0
    %851 = vmatprep.subr.mxu0 0.0
    %852 = vmatpush1.msra.mxu0 0.0
    %853 = vmatprep.subr.mxu0 0.0
    %854 = vmatpush1.msra.mxu0 0.0
    %855 = vmatprep.subr.mxu0 0.0
    %856 = vmatpush1.msra.mxu0 0.0
    %857 = vmatprep.subr.mxu0 0.0
    %858 = vmatpush1.msra.mxu0 0.0
    %859 = vmatprep.subr.mxu0 0.0
    %860 = vmatpush1.msra.mxu0 0.0
    %861 = vmatprep.subr.mxu0 0.0
    %862 = vmatpush1.msra.mxu0 0.0
    %863 = vmatprep.subr.mxu0 0.0
    %864 = vmatpush1.msra.mxu0 0.0
    %865 = vmatprep.subr.mxu0 0.0
    %866 = vmatpush1.msra.mxu0 0.0
    %867 = vmatprep.subr.mxu0 0.0
    %868 = vmatpush1.msra.mxu0 0.0
    %869 = vmatprep.subr.mxu0 0.0
    %870 = vmatpush1.msra.mxu0 0.0
    %871 = vmatprep.subr.mxu0 0.0
    %872 = vmatpush1.msra.mxu0 0.0
    %873 = vmatprep.subr.mxu0 0.0
    %874 = vmatpush1.msra.mxu0 0.0
    %875 = vmatprep.subr.mxu0 0.0
    %876 = vmatpush1.msra.mxu0 0.0
    %877 = vmatprep.subr.mxu0 0.0
    %878 = vmatpush1.msra.mxu0 0.0
    %879 = vmatprep.mubr.f32.mxu0 0.0
    %880 = vmatmul.mubr.f32.gmra.mrb[0].mxu0 %v813
    %v881 = vpop.f32.mrb[0].mxu0
    %v882 = vadd.f32 %v811, %v881
    %v883 = vpop.f32.mrb[0].mxu0
    %884 = vdwg.mxu0
    %v885 = vmul.f32 %v882, %v207
    %v886 = vtanh.pop %v885
    %v887 = vmul.f32 %v207, %v886
    %v888 = vadd.f32 %v887, %v208
    %v889 = vmul.f32 %v888, %v799
    %891 = vrot.lane.b32.xlu0 %v888, 64
    %v892 = vpop.permute.xlu0 %891
    %v894 = vmul.f32 %v888, %v892
    %896 = vrot.lane.b32.xlu0 %v894, 32
    %v897 = vpop.permute.xlu0 %896
    %v899 = vadd.f32 %v889, %v897
    %v900 = vtanh.pop %v899
    %902 = vrot.lane.b32.xlu0 %v900, 64
    %v903 = vpop.permute.xlu0 %902
    %v905 = vmul.f32 %v888, %v903
    %907 = vrot.lane.b32.xlu0 %v905, 32
    %v908 = vpop.permute.xlu0 %907
    %910 = vst.msk [vmem:[#allocation2 + $0x6] sm:$0x1] %vm308, %v908
    %v911 = vrot.slane %v197, 7
    %v913 = vsel %vm209, %v908, 0
    %915 = vmatprep.subr.mxu0 0.0
    %916 = vmatpush1.msra.mxu0 %v200
    %917 = vmatprep.subr.mxu0 0.0
    %918 = vmatpush1.msra.mxu0 %v201
    %919 = vmatprep.subr.mxu0 0.0
    %920 = vmatpush1.msra.mxu0 %v202
    %921 = vmatprep.subr.mxu0 0.0
    %922 = vmatpush1.msra.mxu0 %v203
    %923 = vmatprep.subr.mxu0 0.0
    %924 = vmatpush1.msra.mxu0 0.0
    %925 = vmatprep.subr.mxu0 0.0
    %926 = vmatpush1.msra.mxu0 0.0
    %927 = vmatprep.subr.mxu0 0.0
    %928 = vmatpush1.msra.mxu0 0.0
    %929 = vmatprep.subr.mxu0 0.0
    %930 = vmatpush1.msra.mxu0 0.0
    %931 = vmatprep.subr.mxu0 0.0
    %932 = vmatpush1.msra.mxu0 0.0
    %933 = vmatprep.subr.mxu0 0.0
    %934 = vmatpush1.msra.mxu0 0.0
    %935 = vmatprep.subr.mxu0 0.0
    %936 = vmatpush1.msra.mxu0 0.0
    %937 = vmatprep.subr.mxu0 0.0
    %938 = vmatpush1.msra.mxu0 0.0
    %939 = vmatprep.subr.mxu0 0.0
    %940 = vmatpush1.msra.mxu0 0.0
    %941 = vmatprep.subr.mxu0 0.0
    %942 = vmatpush1.msra.mxu0 0.0
    %943 = vmatprep.subr.mxu0 0.0
    %944 = vmatpush1.msra.mxu0 0.0
    %945 = vmatprep.subr.mxu0 0.0
    %946 = vmatpush1.msra.mxu0 0.0
    %947 = vmatprep.subr.mxu0 0.0
    %948 = vmatpush1.msra.mxu0 0.0
    %949 = vmatprep.subr.mxu0 0.0
    %950 = vmatpush1.msra.mxu0 0.0
    %951 = vmatprep.subr.mxu0 0.0
    %952 = vmatpush1.msra.mxu0 0.0
    %953 = vmatprep.subr.mxu0 0.0
    %954 = vmatpush1.msra.mxu0 0.0
    %955 = vmatprep.subr.mxu0 0.0
    %956 = vmatpush1.msra.mxu0 0.0
    %957 = vmatprep.subr.mxu0 0.0
    %958 = vmatpush1.msra.mxu0 0.0
    %959 = vmatprep.subr.mxu0 0.0
    %960 = vmatpush1.msra.mxu0 0.0
    %961 = vmatprep.subr.mxu0 0.0
    %962 = vmatpush1.msra.mxu0 0.0
    %963 = vmatprep.subr.mxu0 0.0
    %964 = vmatpush1.msra.mxu0 0.0
    %965 = vmatprep.subr.mxu0 0.0
    %966 = vmatpush1.msra.mxu0 0.0
    %967 = vmatprep.subr.mxu0 0.0
    %968 = vmatpush1.msra.mxu0 0.0
    %969 = vmatprep.subr.mxu0 0.0
    %970 = vmatpush1.msra.mxu0 0.0
    %971 = vmatprep.subr.mxu0 0.0
    %972 = vmatpush1.msra.mxu0 0.0
    %973 = vmatprep.subr.mxu0 0.0
    %974 = vmatpush1.msra.mxu0 0.0
    %975 = vmatprep.subr.mxu0 0.0
    %976 = vmatpush1.msra.mxu0 0.0
    %977 = vmatprep.subr.mxu0 0.0
    %978 = vmatpush1.msra.mxu0 0.0
    %979 = vmatprep.mubr.f32.mxu0 0.0
    %980 = vmatmul.mubr.f32.gmra.mrb[0].mxu0 %v913
    %v981 = vpop.f32.mrb[0].mxu0
    %v982 = vadd.f32 %v911, %v981
    %v983 = vpop.f32.mrb[0].mxu0
    %984 = vdwg.mxu0
    %v985 = vmul.f32 %v982, %v207
    %v986 = vtanh.pop %v985
    %v987 = vmul.f32 %v207, %v986
    %v988 = vadd.f32 %v987, %v208
    %v989 = vmul.f32 %v988, %v899
    %991 = vrot.lane.b32.xlu0 %v988, 64
    %v992 = vpop.permute.xlu0 %991
    %v994 = vmul.f32 %v988, %v992
    %996 = vrot.lane.b32.xlu0 %v994, 32
    %v997 = vpop.permute.xlu0 %996
    %v999 = vadd.f32 %v989, %v997
    %v1000 = vtanh.pop %v999
    %1002 = vrot.lane.b32.xlu0 %v1000, 64
    %v1003 = vpop.permute.xlu0 %1002
    %v1005 = vmul.f32 %v988, %v1003
    %1007 = vrot.lane.b32.xlu0 %v1005, 32
    %v1008 = vpop.permute.xlu0 %1007
    %1010 = vst.msk [vmem:[#allocation2 + $0x7] sm:$0x1] %vm308, %v1008
    %v1011 = vld [vmem:[#allocation2] sm:$0xff]
    %v1012 = vld [vmem:[%s5] sm:$0xff]
    %v1013 = vld [vmem:[%s5 + $0x8] sm:$0xff]
    %v1014 = vld [vmem:[%s5 + $0x10] sm:$0xff]
    %v1015 = vld [vmem:[%s5 + $0x18] sm:$0xff]
    %v1016 = vld [vmem:[%s6] sm:$0x1]
    %v1018 = vlaneseq
    %v1019 = vshrl.u32 %v1018, 7
    %v1020 = vsub.s32 0, %v1019
    %v1021 = vrot.slane %v1016, %v1020
    %v1024 = vsel %vm209, %v1011, 0
    %1026 = vmatprep.subr.mxu0 0.0
    %1027 = vmatpush1.msra.mxu0 %v1012
    %1028 = vmatprep.subr.mxu0 0.0
    %1029 = vmatpush1.msra.mxu0 %v1013
    %1030 = vmatprep.subr.mxu0 0.0
    %1031 = vmatpush1.msra.mxu0 %v1014
    %1032 = vmatprep.subr.mxu0 0.0
    %1033 = vmatpush1.msra.mxu0 %v1015
    %1034 = vmatprep.subr.mxu0 0.0
    %1035 = vmatpush1.msra.mxu0 0.0
    %1036 = vmatprep.subr.mxu0 0.0
    %1037 = vmatpush1.msra.mxu0 0.0
    %1038 = vmatprep.subr.mxu0 0.0
    %1039 = vmatpush1.msra.mxu0 0.0
    %1040 = vmatprep.subr.mxu0 0.0
    %1041 = vmatpush1.msra.mxu0 0.0
    %1042 = vmatprep.subr.mxu0 0.0
    %1043 = vmatpush1.msra.mxu0 0.0
    %1044 = vmatprep.subr.mxu0 0.0
    %1045 = vmatpush1.msra.mxu0 0.0
    %1046 = vmatprep.subr.mxu0 0.0
    %1047 = vmatpush1.msra.mxu0 0.0
    %1048 = vmatprep.subr.mxu0 0.0
    %1049 = vmatpush1.msra.mxu0 0.0
    %1050 = vmatprep.subr.mxu0 0.0
    %1051 = vmatpush1.msra.mxu0 0.0
    %1052 = vmatprep.subr.mxu0 0.0
    %1053 = vmatpush1.msra.mxu0 0.0
    %1054 = vmatprep.subr.mxu0 0.0
    %1055 = vmatpush1.msra.mxu0 0.0
    %1056 = vmatprep.subr.mxu0 0.0
    %1057 = vmatpush1.msra.mxu0 0.0
    %1058 = vmatprep.subr.mxu0 0.0
    %1059 = vmatpush1.msra.mxu0 0.0
    %1060 = vmatprep.subr.mxu0 0.0
    %1061 = vmatpush1.msra.mxu0 0.0
    %1062 = vmatprep.subr.mxu0 0.0
    %1063 = vmatpush1.msra.mxu0 0.0
    %1064 = vmatprep.subr.mxu0 0.0
    %1065 = vmatpush1.msra.mxu0 0.0
    %1066 = vmatprep.subr.mxu0 0.0
    %1067 = vmatpush1.msra.mxu0 0.0
    %1068 = vmatprep.subr.mxu0 0.0
    %1069 = vmatpush1.msra.mxu0 0.0
    %1070 = vmatprep.subr.mxu0 0.0
    %1071 = vmatpush1.msra.mxu0 0.0
    %1072 = vmatprep.subr.mxu0 0.0
    %1073 = vmatpush1.msra.mxu0 0.0
    %1074 = vmatprep.subr.mxu0 0.0
    %1075 = vmatpush1.msra.mxu0 0.0
    %1076 = vmatprep.subr.mxu0 0.0
    %1077 = vmatpush1.msra.mxu0 0.0
    %1078 = vmatprep.subr.mxu0 0.0
    %1079 = vmatpush1.msra.mxu0 0.0
    %1080 = vmatprep.subr.mxu0 0.0
    %1081 = vmatpush1.msra.mxu0 0.0
    %1082 = vmatprep.subr.mxu0 0.0
    %1083 = vmatpush1.msra.mxu0 0.0
    %1084 = vmatprep.subr.mxu0 0.0
    %1085 = vmatpush1.msra.mxu0 0.0
    %1086 = vmatprep.subr.mxu0 0.0
    %1087 = vmatpush1.msra.mxu0 0.0
    %1088 = vmatprep.subr.mxu0 0.0
    %1089 = vmatpush1.msra.mxu0 0.0
    %1090 = vmatprep.mubr.f32.mxu0 0.0
    %1091 = vmatmul.mubr.f32.gmra.mrb[0].mxu0 %v1024
    %v1092 = vpop.f32.mrb[0].mxu0
    %v1093 = vadd.f32 %v1021, %v1092
    %v1094 = vpop.f32.mrb[0].mxu0
    %1095 = vdwg.mxu0
    %vm1096 = vcmask 64512
    %v1097 = vsel %vm1096, %v1093, -inf
    %1098 = vmax.xlane.f32.xlu0 %v1097
    %v1099 = vpop.xlane.xlu0 %1098
    %v1100 = vsub.f32 %v1093, %v1099
    %v1101 = vmul.f32 %v1100, 1.442695
    %v1102 = vpow.pop %v1101
    %v1103 = vsel %vm1096, %v1102, 0.0
    %1104 = vadd.xlane.f32.xlu0 %v1103
    %v1105 = vpop.xlane.xlu0 %1104
    %v1106 = vlog2.pop %v1105
    %v1107 = vmul.f32 %v1106, 0.6931472
    %v1108 = vadd.f32 %v1099, %v1107
    %v1109 = vsub.f32 %v1093, %v1108
    %1110 = vst.msk [vmem:[#allocation3] sm:$0xff] %vm1096, %v1109
    // Predicated region
    $region30: #{tpu_custom_call.1} parent=1 // pred_check
      _
    $region31: #{tpu_custom_call.1} parent=1 // pred_check_branch
      %1112 = sbr.rel (0) target = $region33
    $region32: #{tpu_custom_call.1} parent=1 // pred_region
      %s1114 = ssub.s32 128, 128
      %1115 = vsyncadd [#allocation4], %s1114
      %s1117 = sshll.u32 [#allocation3], 4
      %s1118 = int_to_ptr.vmem [resolvable:$true] %s1117
      %1120 = dma.vmem_to_hbm [thread:$0]  %s1118, 128, %s7, [#allocation4]
    $region33: #{tpu_custom_call.1} parent=1 // pred_fallthru
      _
    // Predicated region
    $region34: #{tpu_custom_call.1} parent=1 // pred_check
      _
    $region35: #{tpu_custom_call.1} parent=1 // pred_check_branch
      %1122 = sbr.rel (0) target = $region37
    $region36: #{tpu_custom_call.1} parent=1 // pred_region
      %1123 = dma.done [#allocation4], 128
    $region37: #{tpu_custom_call.1} parent=1 // pred_fallthru
      _
    %1124 = vsyncpa [#allocation4], 1

</llo_original>
